<compile_context>
chip_gen: v7x
topology: tpu7x:2x2x1
jax: 0.10.0
libtpu: 0.0.40
codegen_flags: <defaults>
</compile_context>

<pallas_src>
import jax
import jax.numpy as jnp
from jax import lax
from jax.experimental import pallas as pl
from jax.experimental.pallas import tpu as pltpu

# Small but hardware-aligned stand-in dims (real model: EMBED_DIM=512,
# ResNet d_in=2048, GPT-2 d_in=768).  Lane dims are multiples of 128.
EMBED_DIM = 128
D_IN_IMG = 256
D_IN_TXT = 128
LN_EPS = 1e-5
_INV_SQRT2 = 0.7071067811865476


def _gelu_exact(x):
    # F.gelu default (approximate='none'): 0.5 * x * (1 + erf(x / sqrt(2)))
    return 0.5 * x * (1.0 + lax.erf(x * jnp.float32(_INV_SQRT2)))


def _project_normalize(x_ref, w1_ref, w2_ref, g_ref, b_ref):
    """Projection head (linear1 -> gelu -> linear2 -> residual -> LayerNorm),
    then L2 normalization.  Matmuls run in bf16 with f32 accumulation; all
    elementwise math stays in f32 (important on v5e: no bf16 VPU/EUP path)."""
    x = x_ref[...].astype(jnp.bfloat16)
    e1 = jnp.dot(x, w1_ref[...].astype(jnp.bfloat16),
                 preferred_element_type=jnp.float32)
    h = _gelu_exact(e1).astype(jnp.bfloat16)
    e2 = jnp.dot(h, w2_ref[...].astype(jnp.bfloat16),
                 preferred_element_type=jnp.float32)
    # TODO(synk): nn.Dropout(p=0.5) applied in eval mode (identity); no RNG dropout.
    s = e1 + e2
    mu = jnp.mean(s, axis=-1, keepdims=True)
    var = jnp.mean(jnp.square(s - mu), axis=-1, keepdims=True)
    y = (s - mu) * lax.rsqrt(var + LN_EPS) * g_ref[...] + b_ref[...]
    # torch.norm division; the subsequent F.normalize(p=2, eps=1e-12) is a
    # numerical no-op once the norm is already 1, so one rsqrt-normalize suffices.
    y = y * lax.rsqrt(jnp.sum(y * y, axis=-1, keepdims=True))
    return y


def clip_fused_kernel(img_x_ref, img_w1_ref, img_w2_ref, img_g_ref, img_b_ref,
                      txt_x_ref, txt_w1_ref, txt_w2_ref, txt_g_ref, txt_b_ref,
                      out_ref):
    image_embed = _project_normalize(img_x_ref, img_w1_ref, img_w2_ref,
                                     img_g_ref, img_b_ref)            # [n, E] f32
    caption_embed = _project_normalize(txt_x_ref, txt_w1_ref, txt_w2_ref,
                                       txt_g_ref, txt_b_ref)          # [n, E] f32
    n = caption_embed.shape[0]

    # similarity[i, j] = <caption_i, image_j>.  Single MXU matmul; sim.T is never
    # materialized — column-wise reductions of `sim` replace it.
    sim = lax.dot_general(caption_embed.astype(jnp.bfloat16),
                          image_embed.astype(jnp.bfloat16),
                          (((1,), (1,)), ((), ())),
                          preferred_element_type=jnp.float32)          # [n, n]

    # Diagonal <caption_i, image_i> computed directly (no n×n eye mask).
    diag = jnp.sum(caption_embed * image_embed, axis=-1, keepdims=True)  # (n, 1)

    # Symmetric CLIP cross-entropy with labels = arange(n):
    #   loss_t = mean_i [ logsumexp(sim[i, :]) - sim[i, i] ]
    #   loss_i = mean_j [ logsumexp(sim[:, j]) - sim[j, j] ]
    m_row = jnp.max(sim, axis=1, keepdims=True)                                   # (n, 1)
    lse_row = jnp.log(jnp.sum(jnp.exp(sim - m_row), axis=1, keepdims=True)) + m_row
    m_col = jnp.max(sim, axis=0, keepdims=True)                                   # (1, n)
    lse_col = jnp.log(jnp.sum(jnp.exp(sim - m_col), axis=0, keepdims=True)) + m_col

    inv_n = jnp.float32(1.0 / n)
    sum_diag = jnp.sum(diag, axis=(0, 1), keepdims=True)                          # (1, 1)
    loss_t = (jnp.sum(lse_row, axis=(0, 1), keepdims=True) - sum_diag) * inv_n
    loss_i = (jnp.sum(lse_col, axis=(0, 1), keepdims=True) - sum_diag) * inv_n
    loss = 0.5 * (loss_i + loss_t)                                                # (1, 1)

    # metrics(similarity): first-occurrence argmax along dim=1 and dim=0,
    # compared against arange(n).  m_row / m_col reused as the max values.
    col_idx = lax.broadcasted_iota(jnp.int32, (n, n), 1)
    row_idx = lax.broadcasted_iota(jnp.int32, (n, n), 0)
    img2cap = jnp.min(jnp.where(sim == m_row, col_idx, n), axis=1, keepdims=True)  # (n, 1)
    cap2img = jnp.min(jnp.where(sim == m_col, row_idx, n), axis=0, keepdims=True)  # (1, n)
    y_col = lax.broadcasted_iota(jnp.int32, (n, 1), 0)
    y_row = lax.broadcasted_iota(jnp.int32, (1, n), 1)
    img_acc = jnp.sum((img2cap == y_col).astype(jnp.float32),
                      axis=(0, 1), keepdims=True) * inv_n                          # (1, 1)
    cap_acc = jnp.sum((cap2img == y_row).astype(jnp.float32),
                      axis=(0, 1), keepdims=True) * inv_n                          # (1, 1)

    # Pack the three scalars into one lane-dense (1, 128) output row:
    # lane 0 = loss, lane 1 = img_acc, lane 2 = cap_acc.
    lane = lax.broadcasted_iota(jnp.int32, (1, out_ref.shape[1]), 1)
    out_ref[...] = jnp.where(lane == 0, loss,
                             jnp.where(lane == 1, img_acc,
                                       jnp.where(lane == 2, cap_acc, 0.0)))


def clip_head_fused(img_feats, txt_feats, proj_img, proj_txt):
    """Single pallas_call for both projection heads + CLIP loss/metrics.

    Shapes here are tiny so everything runs as whole-array VMEM blocks (no grid).
    At real model dims (d_in=2048/768, E=512, B in the hundreds) one would add a
    batch grid with BlockSpec pipelining ("parallel" batch axis for v7x megacore)
    and size tiles against v7x's 64 MiB VMEM.
    """
    out = pl.pallas_call(
        clip_fused_kernel,
        out_shape=jax.ShapeDtypeStruct((1, 128), jnp.float32),
        in_specs=[pl.BlockSpec(memory_space=pltpu.MemorySpace.VMEM)] * 10,
        out_specs=pl.BlockSpec(memory_space=pltpu.MemorySpace.VMEM),
    )(img_feats, *proj_img, txt_feats, *proj_txt)
    return out[0, 0], out[0, 1], out[0, 2]


# ---------------------------------------------------------------------------
# Full forward (glue in JAX, all hot-path math in the fused kernel above)
# ---------------------------------------------------------------------------
def clip_forward(images, input_ids, params):
    # TODO(synk): GloVe synonym expansion + GPT2 tokenization are string ops with no
    # Pallas equivalent; input_ids/attention_mask are taken as already-tokenized ints.
    # TODO(synk): frozen pretrained ResNet50 / GPT-2 backbones replaced by deterministic
    # stand-ins (global-avg-pool + linear; token-embedding lookup of the last position).
    pooled = jnp.mean(images, axis=(2, 3))                       # [B, C]
    img_feats = pooled @ params["w_vis_backbone"]                # [B, D_IN_IMG]
    txt_feats = params["tok_embed"][input_ids[:, -1]]            # [B, D_IN_TXT]  (out[:, -1, :])
    return clip_head_fused(img_feats, txt_feats,
                           params["proj_img"], params["proj_txt"])


def make_params(key, num_channels=4, vocab=64):
    ks = jax.random.split(key, 4)

    def proj_params(k, d_in):
        k1, k2 = jax.random.split(k)
        # nn.Linear weights stored transposed: [d_in, d_out]
        w1 = jax.random.normal(k1, (d_in, EMBED_DIM), jnp.float32) / jnp.sqrt(d_in)
        w2 = jax.random.normal(k2, (EMBED_DIM, EMBED_DIM), jnp.float32) / jnp.sqrt(EMBED_DIM)
        gamma = jnp.ones((1, EMBED_DIM), jnp.float32)
        beta = jnp.zeros((1, EMBED_DIM), jnp.float32)
        return (w1, w2, gamma, beta)

    return {
        "w_vis_backbone": jax.random.normal(ks[0], (num_channels, D_IN_IMG),
                                            jnp.float32) / 2.0,
        "tok_embed": jax.random.normal(ks[1], (vocab, D_IN_TXT), jnp.float32)
        / jnp.sqrt(D_IN_TXT),
        "proj_img": proj_params(ks[2], D_IN_IMG),
        "proj_txt": proj_params(ks[3], D_IN_TXT),
    }


if __name__ == "__main__":
    key = jax.random.PRNGKey(0)
    k_img, k_ids, k_par = jax.random.split(key, 3)

    # batch a multiple of 8 (f32 sublane tile), channels/spatial/seq small.
    B, C, H, W = 8, 4, 16, 16
    S, V = 8, 64
    images = jax.random.normal(k_img, (B, C, H, W), jnp.float32)
    input_ids = jax.random.randint(k_ids, (B, S), 0, V, dtype=jnp.int32)
    attention_mask = jnp.ones((B, S), jnp.int32)  # unused by the out[:, -1, :] path

    params = make_params(k_par, num_channels=C, vocab=V)

    loss, img_acc, cap_acc = clip_forward(images, input_ids, params)
    jax.block_until_ready((loss, img_acc, cap_acc))
    print("KERNEL_OK")
</pallas_src>

<mosaic_0001>
module attributes {stable_mosaic.version = 11 : i64} {
  func.func @clip_fused_kernel(%arg0: memref<8x256xf32, #tpu.memory_space<vmem>>, %arg1: memref<256x128xf32, #tpu.memory_space<vmem>>, %arg2: memref<128x128xf32, #tpu.memory_space<vmem>>, %arg3: memref<1x128xf32, #tpu.memory_space<vmem>>, %arg4: memref<1x128xf32, #tpu.memory_space<vmem>>, %arg5: memref<8x128xf32, #tpu.memory_space<vmem>>, %arg6: memref<128x128xf32, #tpu.memory_space<vmem>>, %arg7: memref<128x128xf32, #tpu.memory_space<vmem>>, %arg8: memref<1x128xf32, #tpu.memory_space<vmem>>, %arg9: memref<1x128xf32, #tpu.memory_space<vmem>>, %arg10: memref<1x128xf32, #tpu.memory_space<vmem>>) attributes {dimension_semantics = [], scalar_prefetch = 0 : i64, scratch_operands = 0 : i64, tpu.core_type = #tpu.core_type<tc>} {
    %c0 = arith.constant 0 : index
    %c0_0 = arith.constant 0 : index
    %0 = vector.load %arg0[%c0, %c0_0] : memref<8x256xf32, #tpu.memory_space<vmem>>, vector<8x256xf32>
    %1 = arith.truncf %0 : vector<8x256xf32> to vector<8x256xbf16>
    %c0_1 = arith.constant 0 : index
    %c0_2 = arith.constant 0 : index
    %2 = vector.load %arg1[%c0_1, %c0_2] : memref<256x128xf32, #tpu.memory_space<vmem>>, vector<256x128xf32>
    %3 = arith.truncf %2 : vector<256x128xf32> to vector<256x128xbf16>
    %cst = arith.constant dense<0.000000e+00> : vector<8x128xf32>
    %4 = tpu.matmul %1, %3, %cst {dimension_numbers = #tpu.dot_dimension_numbers<[1], [0], [0], [1], [0, 0, 1, 1], [], []>} : vector<8x256xbf16>, vector<256x128xbf16>, vector<8x128xf32> -> vector<8x128xf32>
    %cst_3 = arith.constant 5.000000e-01 : f32
    %5 = vector.broadcast %cst_3 : f32 to vector<8x128xf32>
    %6 = arith.mulf %5, %4 : vector<8x128xf32>
    %cst_4 = arith.constant 0.707106769 : f32
    %7 = vector.broadcast %cst_4 : f32 to vector<8x128xf32>
    %8 = arith.mulf %4, %7 : vector<8x128xf32>
    %9 = math.erf %8 : vector<8x128xf32>
    %cst_5 = arith.constant 1.000000e+00 : f32
    %10 = vector.broadcast %cst_5 : f32 to vector<8x128xf32>
    %11 = arith.addf %10, %9 : vector<8x128xf32>
    %12 = arith.mulf %6, %11 : vector<8x128xf32>
    %13 = arith.truncf %12 : vector<8x128xf32> to vector<8x128xbf16>
    %c0_6 = arith.constant 0 : index
    %c0_7 = arith.constant 0 : index
    %14 = vector.load %arg2[%c0_6, %c0_7] : memref<128x128xf32, #tpu.memory_space<vmem>>, vector<128x128xf32>
    %15 = arith.truncf %14 : vector<128x128xf32> to vector<128x128xbf16>
    %cst_8 = arith.constant dense<0.000000e+00> : vector<8x128xf32>
    %16 = tpu.matmul %13, %15, %cst_8 {dimension_numbers = #tpu.dot_dimension_numbers<[1], [0], [0], [1], [0, 0, 1, 1], [], []>} : vector<8x128xbf16>, vector<128x128xbf16>, vector<8x128xf32> -> vector<8x128xf32>
    %17 = arith.addf %4, %16 : vector<8x128xf32>
    %cst_9 = arith.constant dense<0.000000e+00> : vector<8xf32>
    %18 = vector.multi_reduction <add>, %17, %cst_9 [1] : vector<8x128xf32> to vector<8xf32>
    %19 = vector.shape_cast %18 : vector<8xf32> to vector<8x1xf32>
    %cst_10 = arith.constant 1.280000e+02 : f32
    %20 = vector.broadcast %cst_10 : f32 to vector<8x1xf32>
    %21 = arith.divf %19, %20 : vector<8x1xf32>
    %22 = vector.broadcast %21 : vector<8x1xf32> to vector<8x128xf32>
    %23 = arith.subf %17, %22 : vector<8x128xf32>
    %24 = arith.mulf %23, %23 : vector<8x128xf32>
    %cst_11 = arith.constant dense<0.000000e+00> : vector<8xf32>
    %25 = vector.multi_reduction <add>, %24, %cst_11 [1] : vector<8x128xf32> to vector<8xf32>
    %26 = vector.shape_cast %25 : vector<8xf32> to vector<8x1xf32>
    %cst_12 = arith.constant 1.280000e+02 : f32
    %27 = vector.broadcast %cst_12 : f32 to vector<8x1xf32>
    %28 = arith.divf %26, %27 : vector<8x1xf32>
    %29 = vector.broadcast %21 : vector<8x1xf32> to vector<8x128xf32>
    %30 = arith.subf %17, %29 : vector<8x128xf32>
    %cst_13 = arith.constant 9.99999974E-6 : f32
    %31 = vector.broadcast %cst_13 : f32 to vector<8x1xf32>
    %32 = arith.addf %28, %31 : vector<8x1xf32>
    %33 = math.rsqrt %32 : vector<8x1xf32>
    %34 = vector.broadcast %33 : vector<8x1xf32> to vector<8x128xf32>
    %35 = arith.mulf %30, %34 : vector<8x128xf32>
    %c0_14 = arith.constant 0 : index
    %c0_15 = arith.constant 0 : index
    %36 = vector.load %arg3[%c0_14, %c0_15] : memref<1x128xf32, #tpu.memory_space<vmem>>, vector<1x128xf32>
    %37 = vector.broadcast %36 : vector<1x128xf32> to vector<8x128xf32>
    %38 = arith.mulf %35, %37 : vector<8x128xf32>
    %c0_16 = arith.constant 0 : index
    %c0_17 = arith.constant 0 : index
    %39 = vector.load %arg4[%c0_16, %c0_17] : memref<1x128xf32, #tpu.memory_space<vmem>>, vector<1x128xf32>
    %40 = vector.broadcast %39 : vector<1x128xf32> to vector<8x128xf32>
    %41 = arith.addf %38, %40 : vector<8x128xf32>
    %42 = arith.mulf %41, %41 : vector<8x128xf32>
    %cst_18 = arith.constant dense<0.000000e+00> : vector<8xf32>
    %43 = vector.multi_reduction <add>, %42, %cst_18 [1] : vector<8x128xf32> to vector<8xf32>
    %44 = vector.shape_cast %43 : vector<8xf32> to vector<8x1xf32>
    %45 = math.rsqrt %44 : vector<8x1xf32>
    %46 = vector.broadcast %45 : vector<8x1xf32> to vector<8x128xf32>
    %47 = arith.mulf %41, %46 : vector<8x128xf32>
    %c0_19 = arith.constant 0 : index
    %c0_20 = arith.constant 0 : index
    %48 = vector.load %arg5[%c0_19, %c0_20] : memref<8x128xf32, #tpu.memory_space<vmem>>, vector<8x128xf32>
    %49 = arith.truncf %48 : vector<8x128xf32> to vector<8x128xbf16>
    %c0_21 = arith.constant 0 : index
    %c0_22 = arith.constant 0 : index
    %50 = vector.load %arg6[%c0_21, %c0_22] : memref<128x128xf32, #tpu.memory_space<vmem>>, vector<128x128xf32>
    %51 = arith.truncf %50 : vector<128x128xf32> to vector<128x128xbf16>
    %cst_23 = arith.constant dense<0.000000e+00> : vector<8x128xf32>
    %52 = tpu.matmul %49, %51, %cst_23 {dimension_numbers = #tpu.dot_dimension_numbers<[1], [0], [0], [1], [0, 0, 1, 1], [], []>} : vector<8x128xbf16>, vector<128x128xbf16>, vector<8x128xf32> -> vector<8x128xf32>
    %cst_24 = arith.constant 5.000000e-01 : f32
    %53 = vector.broadcast %cst_24 : f32 to vector<8x128xf32>
    %54 = arith.mulf %53, %52 : vector<8x128xf32>
    %cst_25 = arith.constant 0.707106769 : f32
    %55 = vector.broadcast %cst_25 : f32 to vector<8x128xf32>
    %56 = arith.mulf %52, %55 : vector<8x128xf32>
    %57 = math.erf %56 : vector<8x128xf32>
    %cst_26 = arith.constant 1.000000e+00 : f32
    %58 = vector.broadcast %cst_26 : f32 to vector<8x128xf32>
    %59 = arith.addf %58, %57 : vector<8x128xf32>
    %60 = arith.mulf %54, %59 : vector<8x128xf32>
    %61 = arith.truncf %60 : vector<8x128xf32> to vector<8x128xbf16>
    %c0_27 = arith.constant 0 : index
    %c0_28 = arith.constant 0 : index
    %62 = vector.load %arg7[%c0_27, %c0_28] : memref<128x128xf32, #tpu.memory_space<vmem>>, vector<128x128xf32>
    %63 = arith.truncf %62 : vector<128x128xf32> to vector<128x128xbf16>
    %cst_29 = arith.constant dense<0.000000e+00> : vector<8x128xf32>
    %64 = tpu.matmul %61, %63, %cst_29 {dimension_numbers = #tpu.dot_dimension_numbers<[1], [0], [0], [1], [0, 0, 1, 1], [], []>} : vector<8x128xbf16>, vector<128x128xbf16>, vector<8x128xf32> -> vector<8x128xf32>
    %65 = arith.addf %52, %64 : vector<8x128xf32>
    %cst_30 = arith.constant dense<0.000000e+00> : vector<8xf32>
    %66 = vector.multi_reduction <add>, %65, %cst_30 [1] : vector<8x128xf32> to vector<8xf32>
    %67 = vector.shape_cast %66 : vector<8xf32> to vector<8x1xf32>
    %cst_31 = arith.constant 1.280000e+02 : f32
    %68 = vector.broadcast %cst_31 : f32 to vector<8x1xf32>
    %69 = arith.divf %67, %68 : vector<8x1xf32>
    %70 = vector.broadcast %69 : vector<8x1xf32> to vector<8x128xf32>
    %71 = arith.subf %65, %70 : vector<8x128xf32>
    %72 = arith.mulf %71, %71 : vector<8x128xf32>
    %cst_32 = arith.constant dense<0.000000e+00> : vector<8xf32>
    %73 = vector.multi_reduction <add>, %72, %cst_32 [1] : vector<8x128xf32> to vector<8xf32>
    %74 = vector.shape_cast %73 : vector<8xf32> to vector<8x1xf32>
    %cst_33 = arith.constant 1.280000e+02 : f32
    %75 = vector.broadcast %cst_33 : f32 to vector<8x1xf32>
    %76 = arith.divf %74, %75 : vector<8x1xf32>
    %77 = vector.broadcast %69 : vector<8x1xf32> to vector<8x128xf32>
    %78 = arith.subf %65, %77 : vector<8x128xf32>
    %cst_34 = arith.constant 9.99999974E-6 : f32
    %79 = vector.broadcast %cst_34 : f32 to vector<8x1xf32>
    %80 = arith.addf %76, %79 : vector<8x1xf32>
    %81 = math.rsqrt %80 : vector<8x1xf32>
    %82 = vector.broadcast %81 : vector<8x1xf32> to vector<8x128xf32>
    %83 = arith.mulf %78, %82 : vector<8x128xf32>
    %c0_35 = arith.constant 0 : index
    %c0_36 = arith.constant 0 : index
    %84 = vector.load %arg8[%c0_35, %c0_36] : memref<1x128xf32, #tpu.memory_space<vmem>>, vector<1x128xf32>
    %85 = vector.broadcast %84 : vector<1x128xf32> to vector<8x128xf32>
    %86 = arith.mulf %83, %85 : vector<8x128xf32>
    %c0_37 = arith.constant 0 : index
    %c0_38 = arith.constant 0 : index
    %87 = vector.load %arg9[%c0_37, %c0_38] : memref<1x128xf32, #tpu.memory_space<vmem>>, vector<1x128xf32>
    %88 = vector.broadcast %87 : vector<1x128xf32> to vector<8x128xf32>
    %89 = arith.addf %86, %88 : vector<8x128xf32>
    %90 = arith.mulf %89, %89 : vector<8x128xf32>
    %cst_39 = arith.constant dense<0.000000e+00> : vector<8xf32>
    %91 = vector.multi_reduction <add>, %90, %cst_39 [1] : vector<8x128xf32> to vector<8xf32>
    %92 = vector.shape_cast %91 : vector<8xf32> to vector<8x1xf32>
    %93 = math.rsqrt %92 : vector<8x1xf32>
    %94 = vector.broadcast %93 : vector<8x1xf32> to vector<8x128xf32>
    %95 = arith.mulf %89, %94 : vector<8x128xf32>
    %96 = arith.truncf %95 : vector<8x128xf32> to vector<8x128xbf16>
    %97 = arith.truncf %47 : vector<8x128xf32> to vector<8x128xbf16>
    %cst_40 = arith.constant dense<0.000000e+00> : vector<8x8xf32>
    %98 = tpu.matmul %96, %97, %cst_40 {dimension_numbers = #tpu.dot_dimension_numbers<[1], [1], [0], [0], [0, 0, 1, 0], [], []>} : vector<8x128xbf16>, vector<8x128xbf16>, vector<8x8xf32> -> vector<8x8xf32>
    %99 = arith.mulf %95, %47 : vector<8x128xf32>
    %cst_41 = arith.constant dense<0.000000e+00> : vector<8xf32>
    %100 = vector.multi_reduction <add>, %99, %cst_41 [1] : vector<8x128xf32> to vector<8xf32>
    %101 = vector.shape_cast %100 : vector<8xf32> to vector<8x1xf32>
    %cst_42 = arith.constant dense<0xFF800000> : vector<8xf32>
    %102 = vector.multi_reduction <maximumf>, %98, %cst_42 [1] : vector<8x8xf32> to vector<8xf32>
    %103 = vector.shape_cast %102 : vector<8xf32> to vector<8x1xf32>
    %104 = vector.broadcast %103 : vector<8x1xf32> to vector<8x8xf32>
    %105 = arith.subf %98, %104 : vector<8x8xf32>
    %106 = math.exp %105 : vector<8x8xf32>
    %cst_43 = arith.constant dense<0.000000e+00> : vector<8xf32>
    %107 = vector.multi_reduction <add>, %106, %cst_43 [1] : vector<8x8xf32> to vector<8xf32>
    %108 = vector.shape_cast %107 : vector<8xf32> to vector<8x1xf32>
    %109 = math.log %108 : vector<8x1xf32>
    %110 = arith.addf %109, %103 : vector<8x1xf32>
    %cst_44 = arith.constant dense<0xFF800000> : vector<8xf32>
    %111 = vector.multi_reduction <maximumf>, %98, %cst_44 [0] : vector<8x8xf32> to vector<8xf32>
    %112 = vector.shape_cast %111 : vector<8xf32> to vector<1x8xf32>
    %113 = vector.broadcast %112 : vector<1x8xf32> to vector<8x8xf32>
    %114 = arith.subf %98, %113 : vector<8x8xf32>
    %115 = math.exp %114 : vector<8x8xf32>
    %cst_45 = arith.constant dense<0.000000e+00> : vector<8xf32>
    %116 = vector.multi_reduction <add>, %115, %cst_45 [0] : vector<8x8xf32> to vector<8xf32>
    %117 = vector.shape_cast %116 : vector<8xf32> to vector<1x8xf32>
    %118 = math.log %117 : vector<1x8xf32>
    %119 = arith.addf %118, %112 : vector<1x8xf32>
    %120 = vector.shape_cast %101 : vector<8x1xf32> to vector<1x8x1xf32>
    %cst_46 = arith.constant dense<0.000000e+00> : vector<1xf32>
    %121 = vector.multi_reduction <add>, %120, %cst_46 [1, 2] : vector<1x8x1xf32> to vector<1xf32>
    %122 = vector.shape_cast %121 : vector<1xf32> to vector<1x1x1xf32>
    %123 = vector.extract %122[0, 0, 0] : f32 from vector<1x1x1xf32>
    %124 = vector.broadcast %123 : f32 to vector<1x1xf32>
    %125 = vector.shape_cast %110 : vector<8x1xf32> to vector<1x8x1xf32>
    %cst_47 = arith.constant dense<0.000000e+00> : vector<1xf32>
    %126 = vector.multi_reduction <add>, %125, %cst_47 [1, 2] : vector<1x8x1xf32> to vector<1xf32>
    %127 = vector.shape_cast %126 : vector<1xf32> to vector<1x1x1xf32>
    %128 = vector.extract %127[0, 0, 0] : f32 from vector<1x1x1xf32>
    %129 = vector.broadcast %128 : f32 to vector<1x1xf32>
    %130 = arith.subf %129, %124 : vector<1x1xf32>
    %cst_48 = arith.constant 1.250000e-01 : f32
    %131 = vector.broadcast %cst_48 : f32 to vector<1x1xf32>
    %132 = arith.mulf %130, %131 : vector<1x1xf32>
    %133 = vector.shape_cast %119 : vector<1x8xf32> to vector<1x1x8xf32>
    %cst_49 = arith.constant dense<0.000000e+00> : vector<1xf32>
    %134 = vector.multi_reduction <add>, %133, %cst_49 [1, 2] : vector<1x1x8xf32> to vector<1xf32>
    %135 = vector.shape_cast %134 : vector<1xf32> to vector<1x1x1xf32>
    %136 = vector.extract %135[0, 0, 0] : f32 from vector<1x1x1xf32>
    %137 = vector.broadcast %136 : f32 to vector<1x1xf32>
    %138 = arith.subf %137, %124 : vector<1x1xf32>
    %cst_50 = arith.constant 1.250000e-01 : f32
    %139 = vector.broadcast %cst_50 : f32 to vector<1x1xf32>
    %140 = arith.mulf %138, %139 : vector<1x1xf32>
    %141 = arith.addf %140, %132 : vector<1x1xf32>
    %cst_51 = arith.constant 5.000000e-01 : f32
    %142 = vector.broadcast %cst_51 : f32 to vector<1x1xf32>
    %143 = arith.mulf %142, %141 : vector<1x1xf32>
    %144 = tpu.iota {dimensions = array<i32: 1>} : vector<8x8xi32>
    %145 = tpu.iota {dimensions = array<i32: 0>} : vector<8x8xi32>
    %146 = vector.broadcast %103 : vector<8x1xf32> to vector<8x8xf32>
    %147 = arith.cmpf oeq, %98, %146 : vector<8x8xf32>
    %c8_i32 = arith.constant 8 : i32
    %148 = vector.broadcast %c8_i32 : i32 to vector<8x8xi32>
    %149 = arith.select %147, %144, %148 : vector<8x8xi1>, vector<8x8xi32>
    %cst_52 = arith.constant dense<2147483647> : vector<8xi32>
    %150 = vector.multi_reduction <minsi>, %149, %cst_52 [1] : vector<8x8xi32> to vector<8xi32>
    %151 = vector.shape_cast %150 : vector<8xi32> to vector<8x1xi32>
    %152 = vector.broadcast %112 : vector<1x8xf32> to vector<8x8xf32>
    %153 = arith.cmpf oeq, %98, %152 : vector<8x8xf32>
    %c8_i32_53 = arith.constant 8 : i32
    %154 = vector.broadcast %c8_i32_53 : i32 to vector<8x8xi32>
    %155 = arith.select %153, %145, %154 : vector<8x8xi1>, vector<8x8xi32>
    %cst_54 = arith.constant dense<2147483647> : vector<8xi32>
    %156 = vector.multi_reduction <minsi>, %155, %cst_54 [0] : vector<8x8xi32> to vector<8xi32>
    %157 = vector.shape_cast %156 : vector<8xi32> to vector<1x8xi32>
    %158 = tpu.iota {dimensions = array<i32: 0>} : vector<8x1xi32>
    %159 = tpu.iota {dimensions = array<i32: 1>} : vector<1x8xi32>
    %160 = arith.cmpi eq, %151, %158 : vector<8x1xi32>
    %161 = arith.extui %160 : vector<8x1xi1> to vector<8x1xi32>
    %162 = arith.sitofp %161 : vector<8x1xi32> to vector<8x1xf32>
    %163 = vector.shape_cast %162 : vector<8x1xf32> to vector<1x8x1xf32>
    %cst_55 = arith.constant dense<0.000000e+00> : vector<1xf32>
    %164 = vector.multi_reduction <add>, %163, %cst_55 [1, 2] : vector<1x8x1xf32> to vector<1xf32>
    %165 = vector.shape_cast %164 : vector<1xf32> to vector<1x1x1xf32>
    %166 = vector.extract %165[0, 0, 0] : f32 from vector<1x1x1xf32>
    %167 = vector.broadcast %166 : f32 to vector<1x1xf32>
    %cst_56 = arith.constant 1.250000e-01 : f32
    %168 = vector.broadcast %cst_56 : f32 to vector<1x1xf32>
    %169 = arith.mulf %167, %168 : vector<1x1xf32>
    %170 = arith.cmpi eq, %157, %159 : vector<1x8xi32>
    %171 = arith.extui %170 : vector<1x8xi1> to vector<1x8xi32>
    %172 = arith.sitofp %171 : vector<1x8xi32> to vector<1x8xf32>
    %173 = vector.shape_cast %172 : vector<1x8xf32> to vector<1x1x8xf32>
    %cst_57 = arith.constant dense<0.000000e+00> : vector<1xf32>
    %174 = vector.multi_reduction <add>, %173, %cst_57 [1, 2] : vector<1x1x8xf32> to vector<1xf32>
    %175 = vector.shape_cast %174 : vector<1xf32> to vector<1x1x1xf32>
    %176 = vector.extract %175[0, 0, 0] : f32 from vector<1x1x1xf32>
    %177 = vector.broadcast %176 : f32 to vector<1x1xf32>
    %cst_58 = arith.constant 1.250000e-01 : f32
    %178 = vector.broadcast %cst_58 : f32 to vector<1x1xf32>
    %179 = arith.mulf %177, %178 : vector<1x1xf32>
    %180 = tpu.iota {dimensions = array<i32: 1>} : vector<1x128xi32>
    %c0_i32 = arith.constant 0 : i32
    %181 = vector.broadcast %c0_i32 : i32 to vector<1x128xi32>
    %182 = arith.cmpi eq, %180, %181 : vector<1x128xi32>
    %c1_i32 = arith.constant 1 : i32
    %183 = vector.broadcast %c1_i32 : i32 to vector<1x128xi32>
    %184 = arith.cmpi eq, %180, %183 : vector<1x128xi32>
    %c2_i32 = arith.constant 2 : i32
    %185 = vector.broadcast %c2_i32 : i32 to vector<1x128xi32>
    %186 = arith.cmpi eq, %180, %185 : vector<1x128xi32>
    %cst_59 = arith.constant 0.000000e+00 : f32
    %187 = vector.shape_cast %179 : vector<1x1xf32> to vector<1x1xf32>
    %188 = vector.broadcast %187 : vector<1x1xf32> to vector<1x128xf32>
    %189 = vector.broadcast %cst_59 : f32 to vector<1x128xf32>
    %190 = arith.select %186, %188, %189 : vector<1x128xi1>, vector<1x128xf32>
    %191 = vector.shape_cast %169 : vector<1x1xf32> to vector<1x1xf32>
    %192 = vector.broadcast %191 : vector<1x1xf32> to vector<1x128xf32>
    %193 = arith.select %184, %192, %190 : vector<1x128xi1>, vector<1x128xf32>
    %194 = vector.shape_cast %143 : vector<1x1xf32> to vector<1x1xf32>
    %195 = vector.broadcast %194 : vector<1x1xf32> to vector<1x128xf32>
    %196 = arith.select %182, %195, %193 : vector<1x128xi1>, vector<1x128xf32>
    %c0_60 = arith.constant 0 : index
    %c0_61 = arith.constant 0 : index
    %197 = vector.load %arg10[%c0_60, %c0_61] : memref<1x128xf32, #tpu.memory_space<vmem>>, vector<1x128xf32>
    tpu.vector_store %arg10[%c0_60, %c0_61], %196 {strides = array<i32>} : memref<1x128xf32, #tpu.memory_space<vmem>>, vector<1x128xf32>,
    return
  }
}

</mosaic_0001>

<llo_original>
// kernel: tpu_custom_call.1
$region0: #{tpu_custom_call.1}
  #allocation0 [shape = 'u32[]', space=smem, size = 0x4, offset = 0x4, fixed_abs, tag = 'smem constant byte address 0x4 - core index']
  #allocation1 [shape = 'u32[144,128]{1,0:T(1,128)}', space=vmem, size = 0x12000, scoped, tag = 'internal scratch']
  %s0 = inlined_call_operand.hbm [shape: f32[8,256], index: 0, kind: input, shape index: {}]
  %s1 = inlined_call_operand.hbm [shape: f32[256,128], index: 1, kind: input, shape index: {}]
  %s2 = inlined_call_operand.hbm [shape: f32[128,128], index: 2, kind: input, shape index: {}]
  %s3 = inlined_call_operand.vmem [shape: f32[1,128], index: 3, kind: input, shape index: {}]
  %s4 = inlined_call_operand.vmem [shape: f32[1,128], index: 4, kind: input, shape index: {}]
  %s5 = inlined_call_operand.vmem [shape: f32[8,128], index: 5, kind: input, shape index: {}]
  %s6 = inlined_call_operand.hbm [shape: f32[128,128], index: 6, kind: input, shape index: {}]
  %s7 = inlined_call_operand.hbm [shape: f32[128,128], index: 7, kind: input, shape index: {}]
  %s8 = inlined_call_operand.vmem [shape: f32[1,128], index: 8, kind: input, shape index: {}]
  %s9 = inlined_call_operand.vmem [shape: f32[1,128], index: 9, kind: input, shape index: {}]
  %s10 = inlined_call_operand.hbm [shape: f32[1,128], index: 10, kind: output, shape index: {}]
  %s11 = sld [smem:[#allocation0]]
  $region70: #{tpu_custom_call.1} parent=0
    _
  %s13 = ssub.s32 1, %s11
  %s14 = scalar_select 0, %s13, %s11
  $region1: #{tpu_custom_call.1} parent=0
    #allocation2 [shape = 'u8[8192]{0}', space=vmem, size = 0x2000, scoped, tag = 'input window, operand 0, single buffered']
    #allocation3 [shape = 's32[1]{0}', space=sflag, size = 0x4, scoped, tag = 'scoped memory for tpu_custom_call.1']
    #allocation4 [shape = 's32[1]{0}', space=sflag, size = 0x4, scoped, tag = 'scoped memory for tpu_custom_call.1']
    #allocation5 [shape = 'u8[131072]{0}', space=vmem, size = 0x20000, scoped, tag = 'input window, operand 1, single buffered']
    #allocation6 [shape = 's32[1]{0}', space=sflag, size = 0x4, scoped, tag = 'scoped memory for tpu_custom_call.1']
    #allocation7 [shape = 'u8[65536]{0}', space=vmem, size = 0x10000, scoped, tag = 'input window, operand 2, single buffered']
    #allocation8 [shape = 'u8[65536]{0}', space=vmem, size = 0x10000, scoped, tag = 'input window, operand 6, single buffered']
    #allocation9 [shape = 's32[1]{0}', space=sflag, size = 0x4, scoped, tag = 'scoped memory for tpu_custom_call.1']
    #allocation10 [shape = 'u8[65536]{0}', space=vmem, size = 0x10000, scoped, tag = 'input window, operand 7, single buffered']
    #allocation11 [shape = 'u8[512]{0}', space=vmem, size = 0x400, scoped, tag = 'output window, operand 0, single buffered']
    %15 = vsyncpa [#allocation3], 0
    %16 = vsyncpa [#allocation6], 0
    %17 = vsyncpa [#allocation9], 0
    %18 = vsyncpa [#allocation4], 0
    // Predicated region
    $region2: #{tpu_custom_call.1} parent=1 // pred_check
      _
    $region3: #{tpu_custom_call.1} parent=1 // pred_check_branch
      %20 = sbr.rel (0) target = $region5
    $region4: #{tpu_custom_call.1} parent=1 // pred_region
      %s22 = ssub.s32 256, 256
      %23 = vsyncadd [#allocation3], %s22
      %s25 = sshll.u32 [#allocation2], 4
      %s26 = int_to_ptr.vmem [resolvable:$true] %s25
      %28 = dma.hbm_to_vmem [thread:$0]  %s0, 256, %s26, [#allocation3]
    $region5: #{tpu_custom_call.1} parent=1 // pred_fallthru
      _
    // Predicated region
    $region6: #{tpu_custom_call.1} parent=1 // pred_check
      _
    $region7: #{tpu_custom_call.1} parent=1 // pred_check_branch
      %30 = sbr.rel (0) target = $region9
    $region8: #{tpu_custom_call.1} parent=1 // pred_region
      %s32 = ssub.s32 4096, 4096
      %33 = vsyncadd [#allocation6], %s32
      %s34 = sshll.u32 [#allocation5], 4
      %s35 = int_to_ptr.vmem [resolvable:$true] %s34
      %40 = dma.hbm_to_vmem [thread:$0]  %s1, 4096, %s35, [#allocation6], 128, 128, 8
    $region9: #{tpu_custom_call.1} parent=1 // pred_fallthru
      _
    // Predicated region
    $region10: #{tpu_custom_call.1} parent=1 // pred_check
      _
    $region11: #{tpu_custom_call.1} parent=1 // pred_check_branch
      %42 = sbr.rel (0) target = $region13
    $region12: #{tpu_custom_call.1} parent=1 // pred_region
      %s44 = ssub.s32 2048, 2048
      %45 = vsyncadd [#allocation6], %s44
      %s46 = sshll.u32 [#allocation7], 4
      %s47 = int_to_ptr.vmem [resolvable:$true] %s46
      %52 = dma.hbm_to_vmem [thread:$0]  %s2, 2048, %s47, [#allocation6], 128, 128, 8
    $region13: #{tpu_custom_call.1} parent=1 // pred_fallthru
      _
    // Predicated region
    $region14: #{tpu_custom_call.1} parent=1 // pred_check
      _
    $region15: #{tpu_custom_call.1} parent=1 // pred_check_branch
      %54 = sbr.rel (0) target = $region17
    $region16: #{tpu_custom_call.1} parent=1 // pred_region
      _
    $region17: #{tpu_custom_call.1} parent=1 // pred_fallthru
      _
    // Predicated region
    $region18: #{tpu_custom_call.1} parent=1 // pred_check
      _
    $region19: #{tpu_custom_call.1} parent=1 // pred_check_branch
      %56 = sbr.rel (0) target = $region21
    $region20: #{tpu_custom_call.1} parent=1 // pred_region
      _
    $region21: #{tpu_custom_call.1} parent=1 // pred_fallthru
      _
    // Predicated region
    $region22: #{tpu_custom_call.1} parent=1 // pred_check
      _
    $region23: #{tpu_custom_call.1} parent=1 // pred_check_branch
      %58 = sbr.rel (0) target = $region25
    $region24: #{tpu_custom_call.1} parent=1 // pred_region
      _
    $region25: #{tpu_custom_call.1} parent=1 // pred_fallthru
      _
    // Predicated region
    $region26: #{tpu_custom_call.1} parent=1 // pred_check
      _
    $region27: #{tpu_custom_call.1} parent=1 // pred_check_branch
      %60 = sbr.rel (0) target = $region29
    $region28: #{tpu_custom_call.1} parent=1 // pred_region
      %s62 = ssub.s32 2048, 2048
      %63 = vsyncadd [#allocation9], %s62
      %s64 = sshll.u32 [#allocation8], 4
      %s65 = int_to_ptr.vmem [resolvable:$true] %s64
      %70 = dma.hbm_to_vmem [thread:$0]  %s6, 2048, %s65, [#allocation9], 128, 128, 8
    $region29: #{tpu_custom_call.1} parent=1 // pred_fallthru
      _
    // Predicated region
    $region30: #{tpu_custom_call.1} parent=1 // pred_check
      _
    $region31: #{tpu_custom_call.1} parent=1 // pred_check_branch
      %72 = sbr.rel (0) target = $region33
    $region32: #{tpu_custom_call.1} parent=1 // pred_region
      %s74 = ssub.s32 2048, 2048
      %75 = vsyncadd [#allocation9], %s74
      %s76 = sshll.u32 [#allocation10], 4
      %s77 = int_to_ptr.vmem [resolvable:$true] %s76
      %82 = dma.hbm_to_vmem [thread:$0]  %s7, 2048, %s77, [#allocation9], 128, 128, 8
    $region33: #{tpu_custom_call.1} parent=1 // pred_fallthru
      _
    // Predicated region
    $region34: #{tpu_custom_call.1} parent=1 // pred_check
      _
    $region35: #{tpu_custom_call.1} parent=1 // pred_check_branch
      %84 = sbr.rel (0) target = $region37
    $region36: #{tpu_custom_call.1} parent=1 // pred_region
      _
    $region37: #{tpu_custom_call.1} parent=1 // pred_fallthru
      _
    // Predicated region
    $region38: #{tpu_custom_call.1} parent=1 // pred_check
      _
    $region39: #{tpu_custom_call.1} parent=1 // pred_check_branch
      %86 = sbr.rel (0) target = $region41
    $region40: #{tpu_custom_call.1} parent=1 // pred_region
      _
    $region41: #{tpu_custom_call.1} parent=1 // pred_fallthru
      _
    // Predicated region
    $region42: #{tpu_custom_call.1} parent=1 // pred_check
      _
    $region43: #{tpu_custom_call.1} parent=1 // pred_check_branch
      %88 = sbr.rel (0) target = $region45
    $region44: #{tpu_custom_call.1} parent=1 // pred_region
      %89 = dma.done [#allocation3], 256
    $region45: #{tpu_custom_call.1} parent=1 // pred_fallthru
      _
    // Predicated region
    $region46: #{tpu_custom_call.1} parent=1 // pred_check
      _
    $region47: #{tpu_custom_call.1} parent=1 // pred_check_branch
      %91 = sbr.rel (0) target = $region49
    $region48: #{tpu_custom_call.1} parent=1 // pred_region
      %92 = dma.done [#allocation6], 4096
    $region49: #{tpu_custom_call.1} parent=1 // pred_fallthru
      _
    // Predicated region
    $region50: #{tpu_custom_call.1} parent=1 // pred_check
      _
    $region51: #{tpu_custom_call.1} parent=1 // pred_check_branch
      %94 = sbr.rel (0) target = $region53
    $region52: #{tpu_custom_call.1} parent=1 // pred_region
      %95 = dma.done [#allocation6], 2048
    $region53: #{tpu_custom_call.1} parent=1 // pred_fallthru
      _
    // Predicated region
    $region54: #{tpu_custom_call.1} parent=1 // pred_check
      _
    $region55: #{tpu_custom_call.1} parent=1 // pred_check_branch
      %97 = sbr.rel (0) target = $region57
    $region56: #{tpu_custom_call.1} parent=1 // pred_region
      %98 = dma.done [#allocation9], 2048
    $region57: #{tpu_custom_call.1} parent=1 // pred_fallthru
      _
    // Predicated region
    $region58: #{tpu_custom_call.1} parent=1 // pred_check
      _
    $region59: #{tpu_custom_call.1} parent=1 // pred_check_branch
      %100 = sbr.rel (0) target = $region61
    $region60: #{tpu_custom_call.1} parent=1 // pred_region
      %101 = dma.done [#allocation9], 2048
    $region61: #{tpu_custom_call.1} parent=1 // pred_fallthru
      _
    %v103 = vld [vmem:[#allocation2] sm:$0xff]
    %v104 = vld [vmem:[#allocation2 + $0x8] sm:$0xff]
    %v105 = vpack.c.bf16 %v103, %v103
    %v106 = vpack.c.bf16 %v104, %v104
    %v107 = vld [vmem:[#allocation5] sm:$0xff]
    %v108 = vld [vmem:[#allocation5 + $0x8] sm:$0xff]
    %v109 = vld [vmem:[#allocation5 + $0x10] sm:$0xff]
    %v110 = vld [vmem:[#allocation5 + $0x18] sm:$0xff]
    %v111 = vld [vmem:[#allocation5 + $0x20] sm:$0xff]
    %v112 = vld [vmem:[#allocation5 + $0x28] sm:$0xff]
    %v113 = vld [vmem:[#allocation5 + $0x30] sm:$0xff]
    %v114 = vld [vmem:[#allocation5 + $0x38] sm:$0xff]
    %v115 = vld [vmem:[#allocation5 + $0x40] sm:$0xff]
    %v116 = vld [vmem:[#allocation5 + $0x48] sm:$0xff]
    %v117 = vld [vmem:[#allocation5 + $0x50] sm:$0xff]
    %v118 = vld [vmem:[#allocation5 + $0x58] sm:$0xff]
    %v119 = vld [vmem:[#allocation5 + $0x60] sm:$0xff]
    %v120 = vld [vmem:[#allocation5 + $0x68] sm:$0xff]
    %v121 = vld [vmem:[#allocation5 + $0x70] sm:$0xff]
    %v122 = vld [vmem:[#allocation5 + $0x78] sm:$0xff]
    %v123 = vld [vmem:[#allocation5 + $0x80] sm:$0xff]
    %v124 = vld [vmem:[#allocation5 + $0x88] sm:$0xff]
    %v125 = vld [vmem:[#allocation5 + $0x90] sm:$0xff]
    %v126 = vld [vmem:[#allocation5 + $0x98] sm:$0xff]
    %v127 = vld [vmem:[#allocation5 + $0xa0] sm:$0xff]
    %v128 = vld [vmem:[#allocation5 + $0xa8] sm:$0xff]
    %v129 = vld [vmem:[#allocation5 + $0xb0] sm:$0xff]
    %v130 = vld [vmem:[#allocation5 + $0xb8] sm:$0xff]
    %v131 = vld [vmem:[#allocation5 + $0xc0] sm:$0xff]
    %v132 = vld [vmem:[#allocation5 + $0xc8] sm:$0xff]
    %v133 = vld [vmem:[#allocation5 + $0xd0] sm:$0xff]
    %v134 = vld [vmem:[#allocation5 + $0xd8] sm:$0xff]
    %v135 = vld [vmem:[#allocation5 + $0xe0] sm:$0xff]
    %v136 = vld [vmem:[#allocation5 + $0xe8] sm:$0xff]
    %v137 = vld [vmem:[#allocation5 + $0xf0] sm:$0xff]
    %v138 = vld [vmem:[#allocation5 + $0xf8] sm:$0xff]
    %v139 = vpack.c.bf16 %v108, %v107
    %v140 = vpack.c.bf16 %v110, %v109
    %v141 = vpack.c.bf16 %v112, %v111
    %v142 = vpack.c.bf16 %v114, %v113
    %v143 = vpack.c.bf16 %v116, %v115
    %v144 = vpack.c.bf16 %v118, %v117
    %v145 = vpack.c.bf16 %v120, %v119
    %v146 = vpack.c.bf16 %v122, %v121
    %v147 = vpack.c.bf16 %v124, %v123
    %v148 = vpack.c.bf16 %v126, %v125
    %v149 = vpack.c.bf16 %v128, %v127
    %v150 = vpack.c.bf16 %v130, %v129
    %v151 = vpack.c.bf16 %v132, %v131
    %v152 = vpack.c.bf16 %v134, %v133
    %v153 = vpack.c.bf16 %v136, %v135
    %v154 = vpack.c.bf16 %v138, %v137
    %155 = vmatprep.subr.bf16.mxu0 0
    %156 = vmatpush1.bf16.msra.mxu0 %v139
    %157 = vmatprep.subr.bf16.mxu0 0
    %158 = vmatpush1.bf16.msra.mxu0 %v140
    %159 = vmatprep.subr.bf16.mxu0 0
    %160 = vmatpush1.bf16.msra.mxu0 %v141
    %161 = vmatprep.subr.bf16.mxu0 0
    %162 = vmatpush1.bf16.msra.mxu0 %v142
    %163 = vmatprep.subr.bf16.mxu0 0
    %164 = vmatpush1.bf16.msra.mxu0 %v143
    %165 = vmatprep.subr.bf16.mxu0 0
    %166 = vmatpush1.bf16.msra.mxu0 %v144
    %167 = vmatprep.subr.bf16.mxu0 0
    %168 = vmatpush1.bf16.msra.mxu0 %v145
    %169 = vmatprep.subr.bf16.mxu0 0
    %170 = vmatpush1.bf16.msra.mxu0 %v146
    %171 = vmatprep.subr.bf16.mxu0 0
    %172 = vmatpush1.bf16.msra.mxu0 %v147
    %173 = vmatprep.subr.bf16.mxu0 0
    %174 = vmatpush1.bf16.msra.mxu0 %v148
    %175 = vmatprep.subr.bf16.mxu0 0
    %176 = vmatpush1.bf16.msra.mxu0 %v149
    %177 = vmatprep.subr.bf16.mxu0 0
    %178 = vmatpush1.bf16.msra.mxu0 %v150
    %179 = vmatprep.subr.bf16.mxu0 0
    %180 = vmatpush1.bf16.msra.mxu0 %v151
    %181 = vmatprep.subr.bf16.mxu0 0
    %182 = vmatpush1.bf16.msra.mxu0 %v152
    %183 = vmatprep.subr.bf16.mxu0 0
    %184 = vmatpush1.bf16.msra.mxu0 %v153
    %185 = vmatprep.subr.bf16.mxu0 0
    %186 = vmatpush1.bf16.msra.mxu0 %v154
    %187 = vmatprep.mubr.bf16.mxu0 %v106
    %188 = vmatmul.mubr.bf16.gmra.mrb[0].mxu0 %v105
    %v189 = vpop.f32.mrb[0].mxu0
    %v190 = vadd.f32 0.0, %v189
    %v191 = vpop.f32.mrb[0].mxu0
    %v192 = vpop.f32.mrb[0].mxu0
    %v193 = vpop.f32.mrb[0].mxu0
    %194 = vdwg.mxu0
    %v195 = vmul.f32 %v190, 0.5
    %v196 = vmul.f32 %v190, 0.70710677
    %v197 = verf.f32.pop %v196
    %v198 = vadd.f32 %v197, 1.0
    %v199 = vmul.f32 %v195, %v198
    %v200 = vpack.c.bf16 %v199, %v199
    %v201 = vld [vmem:[#allocation7] sm:$0xff]
    %v202 = vld [vmem:[#allocation7 + $0x8] sm:$0xff]
    %v203 = vld [vmem:[#allocation7 + $0x10] sm:$0xff]
    %v204 = vld [vmem:[#allocation7 + $0x18] sm:$0xff]
    %v205 = vld [vmem:[#allocation7 + $0x20] sm:$0xff]
    %v206 = vld [vmem:[#allocation7 + $0x28] sm:$0xff]
    %v207 = vld [vmem:[#allocation7 + $0x30] sm:$0xff]
    %v208 = vld [vmem:[#allocation7 + $0x38] sm:$0xff]
    %v209 = vld [vmem:[#allocation7 + $0x40] sm:$0xff]
    %v210 = vld [vmem:[#allocation7 + $0x48] sm:$0xff]
    %v211 = vld [vmem:[#allocation7 + $0x50] sm:$0xff]
    %v212 = vld [vmem:[#allocation7 + $0x58] sm:$0xff]
    %v213 = vld [vmem:[#allocation7 + $0x60] sm:$0xff]
    %v214 = vld [vmem:[#allocation7 + $0x68] sm:$0xff]
    %v215 = vld [vmem:[#allocation7 + $0x70] sm:$0xff]
    %v216 = vld [vmem:[#allocation7 + $0x78] sm:$0xff]
    %v217 = vpack.c.bf16 %v202, %v201
    %v218 = vpack.c.bf16 %v204, %v203
    %v219 = vpack.c.bf16 %v206, %v205
    %v220 = vpack.c.bf16 %v208, %v207
    %v221 = vpack.c.bf16 %v210, %v209
    %v222 = vpack.c.bf16 %v212, %v211
    %v223 = vpack.c.bf16 %v214, %v213
    %v224 = vpack.c.bf16 %v216, %v215
    %225 = vmatprep.subr.bf16.mxu0 0
    %226 = vmatpush1.bf16.msra.mxu0 %v217
    %227 = vmatprep.subr.bf16.mxu0 0
    %228 = vmatpush1.bf16.msra.mxu0 %v218
    %229 = vmatprep.subr.bf16.mxu0 0
    %230 = vmatpush1.bf16.msra.mxu0 %v219
    %231 = vmatprep.subr.bf16.mxu0 0
    %232 = vmatpush1.bf16.msra.mxu0 %v220
    %233 = vmatprep.subr.bf16.mxu0 0
    %234 = vmatpush1.bf16.msra.mxu0 %v221
    %235 = vmatprep.subr.bf16.mxu0 0
    %236 = vmatpush1.bf16.msra.mxu0 %v222
    %237 = vmatprep.subr.bf16.mxu0 0
    %238 = vmatpush1.bf16.msra.mxu0 %v223
    %239 = vmatprep.subr.bf16.mxu0 0
    %240 = vmatpush1.bf16.msra.mxu0 %v224
    %241 = vmatprep.subr.bf16.mxu0 0
    %242 = vmatpush1.bf16.msra.mxu0 0
    %243 = vmatprep.subr.bf16.mxu0 0
    %244 = vmatpush1.bf16.msra.mxu0 0
    %245 = vmatprep.subr.bf16.mxu0 0
    %246 = vmatpush1.bf16.msra.mxu0 0
    %247 = vmatprep.subr.bf16.mxu0 0
    %248 = vmatpush1.bf16.msra.mxu0 0
    %249 = vmatprep.subr.bf16.mxu0 0
    %250 = vmatpush1.bf16.msra.mxu0 0
    %251 = vmatprep.subr.bf16.mxu0 0
    %252 = vmatpush1.bf16.msra.mxu0 0
    %253 = vmatprep.subr.bf16.mxu0 0
    %254 = vmatpush1.bf16.msra.mxu0 0
    %255 = vmatprep.subr.bf16.mxu0 0
    %256 = vmatpush1.bf16.msra.mxu0 0
    %257 = vmatprep.mubr.bf16.mxu0 0
    %258 = vmatmul.mubr.bf16.gmra.mrb[0].mxu0 %v200
    %v259 = vpop.f32.mrb[0].mxu0
    %v260 = vadd.f32 0.0, %v259
    %v261 = vpop.f32.mrb[0].mxu0
    %v262 = vpop.f32.mrb[0].mxu0
    %v263 = vpop.f32.mrb[0].mxu0
    %264 = vdwg.mxu0
    %v265 = vadd.f32 %v190, %v260
    %266 = vadd.xlane.f32.xlu0 %v265
    %v267 = vpop.xlane.xlu0 %266
    %v268 = vrcp.pop 128.0
    %v269 = vmul.f32 %v267, %v268
    %v270 = vsub.f32 %v265, %v269
    %v271 = vmul.f32 %v270, %v270
    %272 = vadd.xlane.f32.xlu0 %v271
    %v273 = vpop.xlane.xlu0 %272
    %v274 = vmul.f32 %v273, %v268
    %v275 = vadd.f32 %v274, 1e-05
    %v276 = vrsqrt.pop %v275
    %v277 = vmul.f32 %v270, %v276
    %v278 = vld [vmem:[%s3] sm:$0x1]
    %v280 = vlaneseq
    %v281 = vshrl.u32 %v280, 7
    %v282 = vsub.s32 0, %v281
    %v283 = vrot.slane %v278, %v282
    %v285 = vmul.f32 %v277, %v283
    %v286 = vld [vmem:[%s4] sm:$0x1]
    %v288 = vlaneseq
    %v289 = vshrl.u32 %v288, 7
    %v290 = vsub.s32 0, %v289
    %v291 = vrot.slane %v286, %v290
    %v293 = vadd.f32 %v285, %v291
    %v294 = vmul.f32 %v293, %v293
    %295 = vadd.xlane.f32.xlu0 %v294
    %v296 = vpop.xlane.xlu0 %295
    %v297 = vrsqrt.pop %v296
    %v298 = vmul.f32 %v293, %v297
    %v299 = vld [vmem:[%s5] sm:$0xff]
    %v300 = vpack.c.bf16 %v299, %v299
    %v301 = vld [vmem:[#allocation8] sm:$0xff]
    %v302 = vld [vmem:[#allocation8 + $0x8] sm:$0xff]
    %v303 = vld [vmem:[#allocation8 + $0x10] sm:$0xff]
    %v304 = vld [vmem:[#allocation8 + $0x18] sm:$0xff]
    %v305 = vld [vmem:[#allocation8 + $0x20] sm:$0xff]
    %v306 = vld [vmem:[#allocation8 + $0x28] sm:$0xff]
    %v307 = vld [vmem:[#allocation8 + $0x30] sm:$0xff]
    %v308 = vld [vmem:[#allocation8 + $0x38] sm:$0xff]
    %v309 = vld [vmem:[#allocation8 + $0x40] sm:$0xff]
    %v310 = vld [vmem:[#allocation8 + $0x48] sm:$0xff]
    %v311 = vld [vmem:[#allocation8 + $0x50] sm:$0xff]
    %v312 = vld [vmem:[#allocation8 + $0x58] sm:$0xff]
    %v313 = vld [vmem:[#allocation8 + $0x60] sm:$0xff]
    %v314 = vld [vmem:[#allocation8 + $0x68] sm:$0xff]
    %v315 = vld [vmem:[#allocation8 + $0x70] sm:$0xff]
    %v316 = vld [vmem:[#allocation8 + $0x78] sm:$0xff]
    %v317 = vpack.c.bf16 %v302, %v301
    %v318 = vpack.c.bf16 %v304, %v303
    %v319 = vpack.c.bf16 %v306, %v305
    %v320 = vpack.c.bf16 %v308, %v307
    %v321 = vpack.c.bf16 %v310, %v309
    %v322 = vpack.c.bf16 %v312, %v311
    %v323 = vpack.c.bf16 %v314, %v313
    %v324 = vpack.c.bf16 %v316, %v315
    %325 = vmatprep.subr.bf16.mxu0 0
    %326 = vmatpush1.bf16.msra.mxu0 %v317
    %327 = vmatprep.subr.bf16.mxu0 0
    %328 = vmatpush1.bf16.msra.mxu0 %v318
    %329 = vmatprep.subr.bf16.mxu0 0
    %330 = vmatpush1.bf16.msra.mxu0 %v319
    %331 = vmatprep.subr.bf16.mxu0 0
    %332 = vmatpush1.bf16.msra.mxu0 %v320
    %333 = vmatprep.subr.bf16.mxu0 0
    %334 = vmatpush1.bf16.msra.mxu0 %v321
    %335 = vmatprep.subr.bf16.mxu0 0
    %336 = vmatpush1.bf16.msra.mxu0 %v322
    %337 = vmatprep.subr.bf16.mxu0 0
    %338 = vmatpush1.bf16.msra.mxu0 %v323
    %339 = vmatprep.subr.bf16.mxu0 0
    %340 = vmatpush1.bf16.msra.mxu0 %v324
    %341 = vmatprep.subr.bf16.mxu0 0
    %342 = vmatpush1.bf16.msra.mxu0 0
    %343 = vmatprep.subr.bf16.mxu0 0
    %344 = vmatpush1.bf16.msra.mxu0 0
    %345 = vmatprep.subr.bf16.mxu0 0
    %346 = vmatpush1.bf16.msra.mxu0 0
    %347 = vmatprep.subr.bf16.mxu0 0
    %348 = vmatpush1.bf16.msra.mxu0 0
    %349 = vmatprep.subr.bf16.mxu0 0
    %350 = vmatpush1.bf16.msra.mxu0 0
    %351 = vmatprep.subr.bf16.mxu0 0
    %352 = vmatpush1.bf16.msra.mxu0 0
    %353 = vmatprep.subr.bf16.mxu0 0
    %354 = vmatpush1.bf16.msra.mxu0 0
    %355 = vmatprep.subr.bf16.mxu0 0
    %356 = vmatpush1.bf16.msra.mxu0 0
    %357 = vmatprep.mubr.bf16.mxu0 0
    %358 = vmatmul.mubr.bf16.gmra.mrb[0].mxu0 %v300
    %v359 = vpop.f32.mrb[0].mxu0
    %v360 = vadd.f32 0.0, %v359
    %v361 = vpop.f32.mrb[0].mxu0
    %v362 = vpop.f32.mrb[0].mxu0
    %v363 = vpop.f32.mrb[0].mxu0
    %364 = vdwg.mxu0
    %v365 = vmul.f32 %v360, 0.5
    %v366 = vmul.f32 %v360, 0.70710677
    %v367 = verf.f32.pop %v366
    %v368 = vadd.f32 %v367, 1.0
    %v369 = vmul.f32 %v365, %v368
    %v370 = vpack.c.bf16 %v369, %v369
    %v371 = vld [vmem:[#allocation10] sm:$0xff]
    %v372 = vld [vmem:[#allocation10 + $0x8] sm:$0xff]
    %v373 = vld [vmem:[#allocation10 + $0x10] sm:$0xff]
    %v374 = vld [vmem:[#allocation10 + $0x18] sm:$0xff]
    %v375 = vld [vmem:[#allocation10 + $0x20] sm:$0xff]
    %v376 = vld [vmem:[#allocation10 + $0x28] sm:$0xff]
    %v377 = vld [vmem:[#allocation10 + $0x30] sm:$0xff]
    %v378 = vld [vmem:[#allocation10 + $0x38] sm:$0xff]
    %v379 = vld [vmem:[#allocation10 + $0x40] sm:$0xff]
    %v380 = vld [vmem:[#allocation10 + $0x48] sm:$0xff]
    %v381 = vld [vmem:[#allocation10 + $0x50] sm:$0xff]
    %v382 = vld [vmem:[#allocation10 + $0x58] sm:$0xff]
    %v383 = vld [vmem:[#allocation10 + $0x60] sm:$0xff]
    %v384 = vld [vmem:[#allocation10 + $0x68] sm:$0xff]
    %v385 = vld [vmem:[#allocation10 + $0x70] sm:$0xff]
    %v386 = vld [vmem:[#allocation10 + $0x78] sm:$0xff]
    %v387 = vpack.c.bf16 %v372, %v371
    %v388 = vpack.c.bf16 %v374, %v373
    %v389 = vpack.c.bf16 %v376, %v375
    %v390 = vpack.c.bf16 %v378, %v377
    %v391 = vpack.c.bf16 %v380, %v379
    %v392 = vpack.c.bf16 %v382, %v381
    %v393 = vpack.c.bf16 %v384, %v383
    %v394 = vpack.c.bf16 %v386, %v385
    %395 = vmatprep.subr.bf16.mxu0 0
    %396 = vmatpush1.bf16.msra.mxu0 %v387
    %397 = vmatprep.subr.bf16.mxu0 0
    %398 = vmatpush1.bf16.msra.mxu0 %v388
    %399 = vmatprep.subr.bf16.mxu0 0
    %400 = vmatpush1.bf16.msra.mxu0 %v389
    %401 = vmatprep.subr.bf16.mxu0 0
    %402 = vmatpush1.bf16.msra.mxu0 %v390
    %403 = vmatprep.subr.bf16.mxu0 0
    %404 = vmatpush1.bf16.msra.mxu0 %v391
    %405 = vmatprep.subr.bf16.mxu0 0
    %406 = vmatpush1.bf16.msra.mxu0 %v392
    %407 = vmatprep.subr.bf16.mxu0 0
    %408 = vmatpush1.bf16.msra.mxu0 %v393
    %409 = vmatprep.subr.bf16.mxu0 0
    %410 = vmatpush1.bf16.msra.mxu0 %v394
    %411 = vmatprep.subr.bf16.mxu0 0
    %412 = vmatpush1.bf16.msra.mxu0 0
    %413 = vmatprep.subr.bf16.mxu0 0
    %414 = vmatpush1.bf16.msra.mxu0 0
    %415 = vmatprep.subr.bf16.mxu0 0
    %416 = vmatpush1.bf16.msra.mxu0 0
    %417 = vmatprep.subr.bf16.mxu0 0
    %418 = vmatpush1.bf16.msra.mxu0 0
    %419 = vmatprep.subr.bf16.mxu0 0
    %420 = vmatpush1.bf16.msra.mxu0 0
    %421 = vmatprep.subr.bf16.mxu0 0
    %422 = vmatpush1.bf16.msra.mxu0 0
    %423 = vmatprep.subr.bf16.mxu0 0
    %424 = vmatpush1.bf16.msra.mxu0 0
    %425 = vmatprep.subr.bf16.mxu0 0
    %426 = vmatpush1.bf16.msra.mxu0 0
    %427 = vmatprep.mubr.bf16.mxu0 0
    %428 = vmatmul.mubr.bf16.gmra.mrb[0].mxu0 %v370
    %v429 = vpop.f32.mrb[0].mxu0
    %v430 = vadd.f32 0.0, %v429
    %v431 = vpop.f32.mrb[0].mxu0
    %v432 = vpop.f32.mrb[0].mxu0
    %v433 = vpop.f32.mrb[0].mxu0
    %434 = vdwg.mxu0
    %v435 = vadd.f32 %v360, %v430
    %436 = vadd.xlane.f32.xlu0 %v435
    %v437 = vpop.xlane.xlu0 %436
    %v438 = vmul.f32 %v437, %v268
    %v439 = vsub.f32 %v435, %v438
    %v440 = vmul.f32 %v439, %v439
    %441 = vadd.xlane.f32.xlu0 %v440
    %v442 = vpop.xlane.xlu0 %441
    %v443 = vmul.f32 %v442, %v268
    %v444 = vadd.f32 %v443, 1e-05
    %v445 = vrsqrt.pop %v444
    %v446 = vmul.f32 %v439, %v445
    %v447 = vld [vmem:[%s8] sm:$0x1]
    %v449 = vlaneseq
    %v450 = vshrl.u32 %v449, 7
    %v451 = vsub.s32 0, %v450
    %v452 = vrot.slane %v447, %v451
    %v454 = vmul.f32 %v446, %v452
    %v455 = vld [vmem:[%s9] sm:$0x1]
    %v457 = vlaneseq
    %v458 = vshrl.u32 %v457, 7
    %v459 = vsub.s32 0, %v458
    %v460 = vrot.slane %v455, %v459
    %v462 = vadd.f32 %v454, %v460
    %v463 = vmul.f32 %v462, %v462
    %464 = vadd.xlane.f32.xlu0 %v463
    %v465 = vpop.xlane.xlu0 %464
    %v466 = vrsqrt.pop %v465
    %v467 = vmul.f32 %v462, %v466
    %v468 = vpack.c.bf16 %v467, %v467
    %v469 = vpack.c.bf16 %v298, %v298
    %470 = vmatprep.subr.bf16.mxu0 0
    %471 = vmatpush1.bf16.xpose.msra.mxu0 %v469
    %472 = vmatprep.subr.bf16.mxu0 0
    %473 = vmatpush1.bf16.xpose.msra.mxu0 0
    %474 = vmatprep.subr.bf16.mxu0 0
    %475 = vmatpush1.bf16.xpose.msra.mxu0 0
    %476 = vmatprep.subr.bf16.mxu0 0
    %477 = vmatpush1.bf16.xpose.msra.mxu0 0
    %478 = vmatprep.subr.bf16.mxu0 0
    %479 = vmatpush1.bf16.xpose.msra.mxu0 0
    %480 = vmatprep.subr.bf16.mxu0 0
    %481 = vmatpush1.bf16.xpose.msra.mxu0 0
    %482 = vmatprep.subr.bf16.mxu0 0
    %483 = vmatpush1.bf16.xpose.msra.mxu0 0
    %484 = vmatprep.subr.bf16.mxu0 0
    %485 = vmatpush1.bf16.xpose.msra.mxu0 0
    %486 = vmatprep.subr.bf16.mxu0 0
    %487 = vmatpush1.bf16.xpose.msra.mxu0 0
    %488 = vmatprep.subr.bf16.mxu0 0
    %489 = vmatpush1.bf16.xpose.msra.mxu0 0
    %490 = vmatprep.subr.bf16.mxu0 0
    %491 = vmatpush1.bf16.xpose.msra.mxu0 0
    %492 = vmatprep.subr.bf16.mxu0 0
    %493 = vmatpush1.bf16.xpose.msra.mxu0 0
    %494 = vmatprep.subr.bf16.mxu0 0
    %495 = vmatpush1.bf16.xpose.msra.mxu0 0
    %496 = vmatprep.subr.bf16.mxu0 0
    %497 = vmatpush1.bf16.xpose.msra.mxu0 0
    %498 = vmatprep.subr.bf16.mxu0 0
    %499 = vmatpush1.bf16.xpose.msra.mxu0 0
    %500 = vmatprep.subr.bf16.mxu0 0
    %501 = vmatpush1.bf16.xpose.msra.mxu0 0
    %502 = vmatprep.mubr.bf16.mxu0 0
    %503 = vmatmul.mubr.bf16.gmra.mrb[0].mxu0 %v468
    %v504 = vpop.f32.mrb[0].mxu0
    %v505 = vadd.f32 0.0, %v504
    %v506 = vpop.f32.mrb[0].mxu0
    %v507 = vpop.f32.mrb[0].mxu0
    %v508 = vpop.f32.mrb[0].mxu0
    %509 = vdwg.mxu0
    %v510 = vmul.f32 %v467, %v298
    %511 = vadd.xlane.f32.xlu0 %v510
    %v512 = vpop.xlane.xlu0 %511
    %vm513 = vcmask 64512
    %v514 = vsel %vm513, %v505, -inf
    %515 = vmax.xlane.f32.xlu0 %v514
    %v516 = vpop.xlane.xlu0 %515
    %v517 = vsub.f32 %v505, %v516
    %v518 = vmul.f32 %v517, 1.442695
    %v519 = vpow.pop %v518
    %v520 = vsel %vm513, %v519, 0.0
    %521 = vadd.xlane.f32.xlu0 %v520
    %v522 = vpop.xlane.xlu0 %521
    %v523 = vlog2.pop %v522
    %v524 = vmul.f32 %v523, 0.6931472
    %v525 = vadd.f32 %v524, %v516
    %v526 = vrot.slane %v514, 4
    %v527 = vmax.f32 %v514, %v526
    %v528 = vrot.slane %v527, 2
    %v529 = vmax.f32 %v527, %v528
    %v530 = vrot.slane %v529, 1
    %v531 = vmax.f32 %v529, %v530
    %v532 = vsub.f32 %v505, %v531
    %v533 = vmul.f32 %v532, 1.442695
    %v534 = vpow.pop %v533
    %v535 = vsel %vm513, %v534, 0.0
    %v536 = vrot.slane %v535, 4
    %v537 = vadd.f32 %v535, %v536
    %v538 = vrot.slane %v537, 2
    %v539 = vadd.f32 %v537, %v538
    %v540 = vrot.slane %v539, 1
    %v541 = vadd.f32 %v539, %v540
    %v542 = vlog2.pop %v541
    %v543 = vmul.f32 %v542, 0.6931472
    %v544 = vadd.f32 %v543, %v531
    %vm545 = vcmask 7168
    %v546 = vsel %vm545, %v512, 0.0
    %547 = vadd.xlane.f32.xlu0 %v546
    %v548 = vpop.xlane.xlu0 %547
    %v549 = vrot.slane %v548, 4
    %v550 = vadd.f32 %v548, %v549
    %v551 = vrot.slane %v550, 2
    %v552 = vadd.f32 %v550, %v551
    %v553 = vrot.slane %v552, 1
    %v554 = vadd.f32 %v552, %v553
    %s555 = vtos %v554
    %v556 = vstv %s555
    %v557 = vsel %vm545, %v525, 0.0
    %558 = vadd.xlane.f32.xlu0 %v557
    %v559 = vpop.xlane.xlu0 %558
    %v560 = vrot.slane %v559, 4
    %v561 = vadd.f32 %v559, %v560
    %v562 = vrot.slane %v561, 2
    %v563 = vadd.f32 %v561, %v562
    %v564 = vrot.slane %v563, 1
    %v565 = vadd.f32 %v563, %v564
    %s566 = vtos %v565
    %v567 = vstv %s566
    %v568 = vsub.f32 %v567, %v556
    %v569 = vmul.f32 %v568, 0.125
    %vm570 = vcmask 57344
    %v571 = vsel %vm570, %v544, 0.0
    %572 = vadd.xlane.f32.xlu0 %v571
    %v573 = vpop.xlane.xlu0 %572
    %v574 = vrot.slane %v573, 4
    %v575 = vadd.f32 %v573, %v574
    %v576 = vrot.slane %v575, 2
    %v577 = vadd.f32 %v575, %v576
    %v578 = vrot.slane %v577, 1
    %v579 = vadd.f32 %v577, %v578
    %s580 = vtos %v579
    %v581 = vstv %s580
    %v582 = vsub.f32 %v581, %v556
    %v583 = vmul.f32 %v582, 0.125
    %v584 = vadd.f32 %v583, %v569
    %v585 = vmul.f32 %v584, 0.5
    %v586 = vlaneseq
    %v587 = vand.u32 %v586, 127
    %v588 = vlaneseq
    %v589 = vshrl.u32 %v588, 7
    %vm590 = vcmp.eq.f32.partialorder %v505, %v516
    %v591 = vsel %vm590, %v587, 8
    %v592 = vsel %vm513, %v591, 2147483647
    %v593 = vand.u32 %v592, 65535
    %v594 = vshra.s32 %v592, 16
    %v595 = vcvt.s32.f32 %v593
    %v596 = vcvt.s32.f32 %v594
    %597 = vmin.xlane.f32.xlu0 %v596
    %v598 = vpop.xlane.xlu0 %597
    %vm599 = vcmp.eq.f32.partialorder %v596, %v598
    %v600 = vsel %vm599, %v595, inf
    %601 = vmin.xlane.f32.xlu0 %v600
    %v602 = vpop.xlane.xlu0 %601
    %v603 = vcvt.f32.s32 %v602
    %v604 = vcvt.f32.s32 %v598
    %v605 = vshll.u32 %v604, 16
    %v606 = vadd.s32 %v605, %v603
    %vm607 = vcmp.eq.f32.partialorder %v505, %v531
    %v608 = vsel %vm607, %v589, 8
    %v609 = vsel %vm513, %v608, 2147483647
    %v610 = vrot.slane %v609, 4
    %vm611 = vcmp.lt.s32.totalorder %v609, %v610
    %v612 = vsel %vm611, %v609, %v610
    %v613 = vrot.slane %v612, 2
    %vm614 = vcmp.lt.s32.totalorder %v612, %v613
    %v615 = vsel %vm614, %v612, %v613
    %v616 = vrot.slane %v615, 1
    %vm617 = vcmp.lt.s32.totalorder %v615, %v616
    %v618 = vsel %vm617, %v615, %v616
    %vm619 = vcmp.eq.s32.totalorder %v606, %v589
    %v620 = vsel %vm619, 1, 0
    %v621 = vcvt.s32.f32 %v620
    %v622 = vsel %vm545, %v621, 0.0
    %623 = vadd.xlane.f32.xlu0 %v622
    %v624 = vpop.xlane.xlu0 %623
    %v625 = vrot.slane %v624, 4
    %v626 = vadd.f32 %v624, %v625
    %v627 = vrot.slane %v626, 2
    %v628 = vadd.f32 %v626, %v627
    %v629 = vrot.slane %v628, 1
    %v630 = vadd.f32 %v628, %v629
    %s631 = vtos %v630
    %v632 = vstv %s631
    %v633 = vmul.f32 %v632, 0.125
    %vm634 = vcmp.eq.s32.totalorder %v618, %v587
    %v635 = vsel %vm634, 1, 0
    %v636 = vcvt.s32.f32 %v635
    %v637 = vsel %vm570, %v636, 0.0
    %638 = vadd.xlane.f32.xlu0 %v637
    %v639 = vpop.xlane.xlu0 %638
    %v640 = vrot.slane %v639, 4
    %v641 = vadd.f32 %v639, %v640
    %v642 = vrot.slane %v641, 2
    %v643 = vadd.f32 %v641, %v642
    %v644 = vrot.slane %v643, 1
    %v645 = vadd.f32 %v643, %v644
    %s646 = vtos %v645
    %v647 = vstv %s646
    %v648 = vmul.f32 %v647, 0.125
    %vm649 = vcmp.eq.s32.totalorder %v587, 0
    %vm650 = vcmp.eq.s32.totalorder %v587, 1
    %vm651 = vcmp.eq.s32.totalorder %v587, 2
    %v652 = vsel %vm651, %v648, 0.0
    %v653 = vsel %vm650, %v633, %v652
    %v654 = vsel %vm649, %v585, %v653
    %655 = vst [vmem:[#allocation11] sm:$0x1] %v654
    // Predicated region
    $region62: #{tpu_custom_call.1} parent=1 // pred_check
      _
    $region63: #{tpu_custom_call.1} parent=1 // pred_check_branch
      %657 = sbr.rel (0) target = $region65
    $region64: #{tpu_custom_call.1} parent=1 // pred_region
      %s659 = ssub.s32 16, 16
      %660 = vsyncadd [#allocation4], %s659
      %s662 = sshll.u32 [#allocation11], 4
      %s663 = int_to_ptr.vmem [resolvable:$true] %s662
      %665 = dma.vmem_to_hbm [thread:$0]  %s663, 16, %s10, [#allocation4]
    $region65: #{tpu_custom_call.1} parent=1 // pred_fallthru
      _
    // Predicated region
    $region66: #{tpu_custom_call.1} parent=1 // pred_check
      _
    $region67: #{tpu_custom_call.1} parent=1 // pred_check_branch
      %667 = sbr.rel (0) target = $region69
    $region68: #{tpu_custom_call.1} parent=1 // pred_region
      %668 = dma.done [#allocation4], 16
    $region69: #{tpu_custom_call.1} parent=1 // pred_fallthru
      _
    %669 = vsyncpa [#allocation3], 1
    %670 = vsyncpa [#allocation6], 1
    %671 = vsyncpa [#allocation9], 1
    %672 = vsyncpa [#allocation4], 1

</llo_original>
